<compile_context>
chip_gen: v7x
topology: tpu7x:2x2x1
jax: 0.10.0
libtpu: 0.0.40
codegen_flags: <defaults>
</compile_context>

<pallas_src>
import jax
import jax.numpy as jnp
from jax.experimental import pallas as pl
from jax.experimental.pallas import tpu as pltpu


def _round_up(x, m):
    return ((x + m - 1) // m) * m


# ---------------------------------------------------------------------------
# Kernels: streaming multiply-reduce over (K, tb) tiles, batch on the lane
# axis -> sublane reduce produces a lane-dense (1, tb) output block.
# ---------------------------------------------------------------------------
def _mf_kernel(u_ref, i_ref, out_ref):
    u = u_ref[...].astype(jnp.float32)          # upcast in-kernel (native-dtype DMA)
    v = i_ref[...].astype(jnp.float32)
    out_ref[...] = jnp.sum(u * v, axis=0, keepdims=True)


def _mf_kernel_bias(u_ref, i_ref, b_ref, out_ref):
    u = u_ref[...].astype(jnp.float32)
    v = i_ref[...].astype(jnp.float32)
    out_ref[...] = jnp.sum(u * v, axis=0, keepdims=True) + b_ref[...]


# ---------------------------------------------------------------------------
# Plain fused-XLA path for small batches (gather+mul+reduce fuses in one pass).
# ---------------------------------------------------------------------------
def _mf_xla(uids, iids, u_factors, i_factors, u_biases, i_biases,
            use_bias, global_mean):
    ue = jnp.take(u_factors, uids, axis=0).astype(jnp.float32)
    ie = jnp.take(i_factors, iids, axis=0).astype(jnp.float32)
    preds = jnp.sum(ue * ie, axis=1)
    if use_bias:
        preds = (preds
                 + jnp.take(u_biases.reshape(-1), uids).astype(jnp.float32)
                 + jnp.take(i_biases.reshape(-1), iids).astype(jnp.float32)
                 + jnp.float32(global_mean))
    return preds


def mf_forward(uids, iids, u_factors, i_factors, u_biases=None, i_biases=None,
               *, use_bias=True, global_mean=0.0, dropout=0.0,
               tb=2048, pallas_min_batch=4096, force_pallas=False):
    """MF forward. Returns preds of shape (B,) float32 ((-,) -> scalar if B==1)."""
    del dropout  # eval-mode identity; see TODO at top of file
    B = uids.shape[0]
    K = u_factors.shape[1]

    # ---- small-batch bypass: pallas_call fixed cost > useful work ----------
    if (not force_pallas) and B < pallas_min_batch:
        preds = _mf_xla(uids, iids, u_factors, i_factors, u_biases, i_biases,
                        use_bias, global_mean)
        return preds.reshape(()) if B == 1 else preds

    # ---- tile selection: big tiles, but keep >= 2 grid steps when possible -
    half = (B + 1) // 2
    tb_eff = min(tb, max(128, _round_up(half, 128)))
    Bp = _round_up(B, tb_eff)
    pad = Bp - B

    # ---- wrapper-side gather (XLA), native dtype; pad+transpose fuse -------
    ue_t = jnp.pad(jnp.take(u_factors, uids, axis=0), ((0, pad), (0, 0))).T  # (K, Bp)
    ie_t = jnp.pad(jnp.take(i_factors, iids, axis=0), ((0, pad), (0, 0))).T  # (K, Bp)

    grid = (Bp // tb_eff,)
    factor_spec = pl.BlockSpec((K, tb_eff), lambda i: (0, i))
    out_spec = pl.BlockSpec((1, tb_eff), lambda i: (0, i))
    cparams = pltpu.CompilerParams(dimension_semantics=("parallel",))

    if use_bias:
        bvec = (jnp.take(u_biases.reshape(-1), uids).astype(jnp.float32)
                + jnp.take(i_biases.reshape(-1), iids).astype(jnp.float32)
                + jnp.float32(global_mean))                                  # (B,)
        bias_row = jnp.pad(bvec, (0, pad)).reshape(1, Bp)                    # (1, Bp)
        out = pl.pallas_call(
            _mf_kernel_bias,
            out_shape=jax.ShapeDtypeStruct((1, Bp), jnp.float32),
            grid=grid,
            in_specs=[factor_spec, factor_spec,
                      pl.BlockSpec((1, tb_eff), lambda i: (0, i))],
            out_specs=out_spec,
            compiler_params=cparams,
        )(ue_t, ie_t, bias_row)
    else:
        out = pl.pallas_call(
            _mf_kernel,
            out_shape=jax.ShapeDtypeStruct((1, Bp), jnp.float32),
            grid=grid,
            in_specs=[factor_spec, factor_spec],
            out_specs=out_spec,
            compiler_params=cparams,
        )(ue_t, ie_t)

    preds = out[0, :B]
    return preds.reshape(()) if B == 1 else preds   # torch .squeeze() parity


def _reference(uids, iids, u_factors, i_factors, u_biases, i_biases,
               use_bias, global_mean):
    uf = u_factors.astype(jnp.float32)
    if_ = i_factors.astype(jnp.float32)
    ref = jnp.sum(uf[uids] * if_[iids], axis=1)
    if use_bias:
        ref = (ref + u_biases.reshape(-1)[uids] + i_biases.reshape(-1)[iids]
               + jnp.float32(global_mean))
    return ref


if __name__ == "__main__":
    key = jax.random.PRNGKey(0)
    k_uf, k_if, k_ub, k_ib, k_u, k_i = jax.random.split(key, 6)

    # Small, deterministic synthetic MF parameters.
    num_users, num_items, num_factors = 64, 96, 32
    batch = 300                 # not a multiple of the tile -> exercises padding
    global_mean = 3.5

    u_factors = jax.random.normal(k_uf, (num_users, num_factors), jnp.float32) * 0.1
    i_factors = jax.random.normal(k_if, (num_items, num_factors), jnp.float32) * 0.1
    u_biases = jax.random.normal(k_ub, (num_users, 1), jnp.float32) * 0.01
    i_biases = jax.random.normal(k_ib, (num_items, 1), jnp.float32) * 0.01

    uids = jax.random.randint(k_u, (batch,), 0, num_users, jnp.int32)
    iids = jax.random.randint(k_i, (batch,), 0, num_items, jnp.int32)

    fwd = jax.jit(mf_forward,
                  static_argnames=("use_bias", "tb", "pallas_min_batch", "force_pallas"))

    ok = True

    # f32 tables, with & without bias, forced through the Pallas kernel.
    for use_bias in (True, False):
        preds = fwd(uids, iids, u_factors, i_factors, u_biases, i_biases,
                    use_bias=use_bias, global_mean=global_mean, force_pallas=True)
        preds = jax.block_until_ready(preds)
        ref = _reference(uids, iids, u_factors, i_factors, u_biases, i_biases,
                         use_bias, global_mean)
        ok &= (preds.shape == (batch,))
        ok &= bool(jnp.allclose(preds, ref, atol=1e-5, rtol=1e-5))

    # bf16 tables: streamed narrow, upcast inside the kernel, f32 accumulation.
    uf_bf = u_factors.astype(jnp.bfloat16)
    if_bf = i_factors.astype(jnp.bfloat16)
    preds = fwd(uids, iids, uf_bf, if_bf, u_biases, i_biases,
                use_bias=True, global_mean=global_mean, force_pallas=True)
    preds = jax.block_until_ready(preds)
    ref = _reference(uids, iids, uf_bf, if_bf, u_biases, i_biases, True, global_mean)
    ok &= bool(jnp.allclose(preds, ref, atol=1e-3, rtol=1e-3))

    # Small-batch auto-gate (plain fused XLA path) -- correctness only.
    preds = fwd(uids, iids, u_factors, i_factors, u_biases, i_biases,
                use_bias=True, global_mean=global_mean, force_pallas=False)
    preds = jax.block_until_ready(preds)
    ref = _reference(uids, iids, u_factors, i_factors, u_biases, i_biases,
                     True, global_mean)
    ok &= bool(jnp.allclose(preds, ref, atol=1e-5, rtol=1e-5))

    assert ok
    print("KERNEL_OK")
</pallas_src>

<mosaic_0001>
module attributes {stable_mosaic.version = 11 : i64} {
  func.func @_mf_kernel_bias(%arg0: i32, %arg1: memref<32x256xf32, #tpu.memory_space<vmem>>, %arg2: memref<32x256xf32, #tpu.memory_space<vmem>>, %arg3: memref<1x256xf32, #tpu.memory_space<vmem>>, %arg4: memref<1x256xf32, #tpu.memory_space<vmem>>) attributes {dimension_semantics = [#tpu.dimension_semantics<parallel>], iteration_bounds = array<i64: 2>, scalar_prefetch = 0 : i64, scratch_operands = 0 : i64, tpu.core_type = #tpu.core_type<tc>, window_params = [{transform_indices = @transform_0, window_bounds = array<i64: 32, 256>}, {transform_indices = @transform_1, window_bounds = array<i64: 32, 256>}, {transform_indices = @transform_2, window_bounds = array<i64: 1, 256>}, {transform_indices = @transform_3, window_bounds = array<i64: 1, 256>}]} {
    %c0 = arith.constant 0 : index
    %c0_0 = arith.constant 0 : index
    %0 = vector.load %arg1[%c0, %c0_0] : memref<32x256xf32, #tpu.memory_space<vmem>>, vector<32x256xf32>
    %c0_1 = arith.constant 0 : index
    %c0_2 = arith.constant 0 : index
    %1 = vector.load %arg2[%c0_1, %c0_2] : memref<32x256xf32, #tpu.memory_space<vmem>>, vector<32x256xf32>
    %2 = arith.mulf %0, %1 : vector<32x256xf32>
    %cst = arith.constant dense<0.000000e+00> : vector<256xf32>
    %3 = vector.multi_reduction <add>, %2, %cst [0] : vector<32x256xf32> to vector<256xf32>
    %4 = vector.shape_cast %3 : vector<256xf32> to vector<1x256xf32>
    %c0_3 = arith.constant 0 : index
    %c0_4 = arith.constant 0 : index
    %5 = vector.load %arg3[%c0_3, %c0_4] : memref<1x256xf32, #tpu.memory_space<vmem>>, vector<1x256xf32>
    %6 = arith.addf %4, %5 : vector<1x256xf32>
    %c0_5 = arith.constant 0 : index
    %c0_6 = arith.constant 0 : index
    %7 = vector.load %arg4[%c0_5, %c0_6] : memref<1x256xf32, #tpu.memory_space<vmem>>, vector<1x256xf32>
    tpu.vector_store %arg4[%c0_5, %c0_6], %6 {strides = array<i32>} : memref<1x256xf32, #tpu.memory_space<vmem>>, vector<1x256xf32>,
    return
  }
  func.func @transform_0(%arg0: i32) -> (i32, i32) {
    %c0_i32 = arith.constant 0 : i32
    %c0_i32_0 = arith.constant 0 : i32
    return %c0_i32, %arg0 : i32, i32
  }
  func.func @transform_1(%arg0: i32) -> (i32, i32) {
    %c0_i32 = arith.constant 0 : i32
    %c0_i32_0 = arith.constant 0 : i32
    return %c0_i32, %arg0 : i32, i32
  }
  func.func @transform_2(%arg0: i32) -> (i32, i32) {
    %c0_i32 = arith.constant 0 : i32
    %c0_i32_0 = arith.constant 0 : i32
    return %c0_i32, %arg0 : i32, i32
  }
  func.func @transform_3(%arg0: i32) -> (i32, i32) {
    %c0_i32 = arith.constant 0 : i32
    %c0_i32_0 = arith.constant 0 : i32
    return %c0_i32, %arg0 : i32, i32
  }
}

</mosaic_0001>

<llo_original>
// kernel: mf_forward.1
$region0: #{mf_forward.1}
  #allocation0 [shape = 'u32[]', space=smem, size = 0x4, offset = 0x4, fixed_abs, tag = 'smem constant byte address 0x4 - core index']
  #allocation1 [shape = 'u32[144,128]{1,0:T(1,128)}', space=vmem, size = 0x12000, scoped, tag = 'internal scratch']
  %s0 = inlined_call_operand.vmem [shape: f32[32,512], index: 0, kind: input, shape index: {}]
  %s1 = inlined_call_operand.vmem [shape: f32[32,512], index: 1, kind: input, shape index: {}]
  %s2 = inlined_call_operand.vmem [shape: f32[1,512], index: 2, kind: input, shape index: {}]
  %s3 = inlined_call_operand.vmem [shape: f32[1,512], index: 3, kind: output, shape index: {}]
  %s4 = sld [smem:[#allocation0]]
  $region91: #{mf_forward.1} parent=0
    _
  %s6 = ssub.s32 1, %s4
  %s7 = scalar_select 0, %s6, %s4
  $region1: #{mf_forward.1} parent=0
    #allocation2 [shape = 'u8[65536]{0}', space=vmem, size = 0x10000, scoped, tag = 'input window, operand 0']
    #allocation3 [shape = 'u8[65536]{0}', space=vmem, size = 0x10000, scoped, tag = 'input window, operand 1']
    loop: start=0, step=1, limit=4
    $region2: #{mf_forward.1} parent=1 // loop_pre_header
      _
    $region3: #{mf_forward.1} parent=1 // loop_header
      %s9 = sphi 0, %s13
      %p10 = scmp.ge.s32.totalorder %s9, 4
      %s19 = sphi 0, %s21
      %s22 = sphi 0, %s19
      %s23 = sphi 0, %s22
      %s39 = sphi 0, %s23
      %s45 = sphi 0, %s47
      %s48 = sphi 0, %s45
      %s49 = sphi 0, %s48
      %s65 = sphi 0, %s49
      %s71 = sphi 0, %s73
      %s74 = sphi 0, %s71
      %s75 = sphi 0, %s74
      %s91 = sphi 0, %s75
      %s97 = sphi 0, %s99
      %s100 = sphi 0, %s97
      %s101 = sphi 0, %s100
      %s117 = sphi 0, %s101
    $region4: #{mf_forward.1} parent=1 // loop_header_branch
      %12 = sbr.rel (%p10) target = $region8
    $region5: #{mf_forward.1} parent=1 // loop_body
      %s14 = ssub.s32 %s9, 1
      %s15 = ssub.s32 %s9, 2
      %s16 = sadd.s32 %s9, 1
      %s17 = ssub.s32 %s9, %s16
      %p18 = scmp.eq.s32.totalorder %s17, 0
      %s20 = sadd.s32 %s19, 1
      %s21 = scalar_select %p18, %s19, %s20
      %p24 = pneg %p18
      %p25 = scmp.eq.s32.totalorder %s9, 1
      %p26 = por %p24, %p25
      %p27 = scmp.ne.s32.totalorder %s19, %s22
      %p28 = scmp.eq.s32.totalorder %s9, 0
      %p29 = por %p27, %p28
      %p30 = scmp.ne.s32.totalorder %s19, %s22
      %p31 = scmp.eq.s32.totalorder %s14, 1
      %p32 = por %p30, %p31
      %p33 = scmp.ne.s32.totalorder %s22, %s23
      %p34 = scmp.eq.s32.totalorder %s14, 0
      %p35 = por %p33, %p34
      %p36 = scmp.ne.s32.totalorder %s22, %s23
      %p37 = scmp.eq.s32.totalorder %s15, 1
      %p38 = por %p36, %p37
      %p40 = scmp.ne.s32.totalorder %s23, %s39
      %p41 = scmp.eq.s32.totalorder %s15, 0
      %p42 = por %p40, %p41
      %s43 = ssub.s32 %s9, %s16
      %p44 = scmp.eq.s32.totalorder %s43, 0
      %s46 = sadd.s32 %s45, 1
      %s47 = scalar_select %p44, %s45, %s46
      %p50 = pneg %p44
      %p51 = scmp.eq.s32.totalorder %s9, 1
      %p52 = por %p50, %p51
      %p53 = scmp.ne.s32.totalorder %s45, %s48
      %p54 = scmp.eq.s32.totalorder %s9, 0
      %p55 = por %p53, %p54
      %p56 = scmp.ne.s32.totalorder %s45, %s48
      %p57 = scmp.eq.s32.totalorder %s14, 1
      %p58 = por %p56, %p57
      %p59 = scmp.ne.s32.totalorder %s48, %s49
      %p60 = scmp.eq.s32.totalorder %s14, 0
      %p61 = por %p59, %p60
      %p62 = scmp.ne.s32.totalorder %s48, %s49
      %p63 = scmp.eq.s32.totalorder %s15, 1
      %p64 = por %p62, %p63
      %p66 = scmp.ne.s32.totalorder %s49, %s65
      %p67 = scmp.eq.s32.totalorder %s15, 0
      %p68 = por %p66, %p67
      %s69 = ssub.s32 %s9, %s16
      %p70 = scmp.eq.s32.totalorder %s69, 0
      %s72 = sadd.s32 %s71, 1
      %s73 = scalar_select %p70, %s71, %s72
      %p76 = pneg %p70
      %p77 = scmp.eq.s32.totalorder %s9, 1
      %p78 = por %p76, %p77
      %p79 = scmp.ne.s32.totalorder %s71, %s74
      %p80 = scmp.eq.s32.totalorder %s9, 0
      %p81 = por %p79, %p80
      %p82 = scmp.ne.s32.totalorder %s71, %s74
      %p83 = scmp.eq.s32.totalorder %s14, 1
      %p84 = por %p82, %p83
      %p85 = scmp.ne.s32.totalorder %s74, %s75
      %p86 = scmp.eq.s32.totalorder %s14, 0
      %p87 = por %p85, %p86
      %p88 = scmp.ne.s32.totalorder %s74, %s75
      %p89 = scmp.eq.s32.totalorder %s15, 1
      %p90 = por %p88, %p89
      %p92 = scmp.ne.s32.totalorder %s75, %s91
      %p93 = scmp.eq.s32.totalorder %s15, 0
      %p94 = por %p92, %p93
      %s95 = ssub.s32 %s9, %s16
      %p96 = scmp.eq.s32.totalorder %s95, 0
      %s98 = sadd.s32 %s97, 1
      %s99 = scalar_select %p96, %s97, %s98
      %p102 = pneg %p96
      %p103 = scmp.eq.s32.totalorder %s9, 1
      %p104 = por %p102, %p103
      %p105 = scmp.ne.s32.totalorder %s97, %s100
      %p106 = scmp.eq.s32.totalorder %s9, 0
      %p107 = por %p105, %p106
      %p108 = scmp.ne.s32.totalorder %s97, %s100
      %p109 = scmp.eq.s32.totalorder %s14, 1
      %p110 = por %p108, %p109
      %p111 = scmp.ne.s32.totalorder %s100, %s101
      %p112 = scmp.eq.s32.totalorder %s14, 0
      %p113 = por %p111, %p112
      %p114 = scmp.ne.s32.totalorder %s100, %s101
      %p115 = scmp.eq.s32.totalorder %s15, 1
      %p116 = por %p114, %p115
      %p118 = scmp.ne.s32.totalorder %s101, %s117
      %p119 = scmp.eq.s32.totalorder %s15, 0
      %p120 = por %p118, %p119
      %p121 = scmp.le.s32.totalorder 1, %s9
      %p122 = scmp.lt.s32.totalorder %s9, 3
      %p123 = pnand %p121, %p122
      %p124 = pneg %p123
      // Predicated region
      $region9: #{mf_forward.1} parent=5 // pred_check
        _
      $region10: #{mf_forward.1} parent=5 // pred_check_branch
        %126 = sbr.rel (%p123) target = $region12
      $region11: #{mf_forward.1} parent=5 // pred_region
        %s127 = ssub.s32 %s9, 1
      $region12: #{mf_forward.1} parent=5 // pred_fallthru
        _
      %p128 = scmp.lt.s32.totalorder %s9, 2
      // Predicated region
      $region13: #{mf_forward.1} parent=5 // pred_check
        %p129 = pneg %p128
      $region14: #{mf_forward.1} parent=5 // pred_check_branch
        %131 = sbr.rel (%p129) target = $region16
      $region15: #{mf_forward.1} parent=5 // pred_region
        // Predicated region
        $region17: #{mf_forward.1} parent=15 // pred_check
          %p132 = pneg %p29
        $region18: #{mf_forward.1} parent=15 // pred_check_branch
          %134 = sbr.rel (%p132) target = $region20
        $region19: #{mf_forward.1} parent=15 // pred_region
          %s135 = sand.u32 %s19, 1
          %s136 = sand.u32 %s19, 1
          %s137 = smul.addr %s136, 64
          %s138 = scalar_lea.vmem [#allocation2], %s137
          %s139 = smul.u32 2, %s9
          %s140 = smul.addr %s139, 8
          %s141 = scalar_lea.vmem %s0, %s140
          // Predicated region
          $region21: #{mf_forward.1} parent=19 // pred_check
            _
          $region22: #{mf_forward.1} parent=19 // pred_check_branch
            %143 = sbr.rel (0) target = $region24
          $region23: #{mf_forward.1} parent=19 // pred_region
            // Predicated region
            $region25: #{mf_forward.1} parent=23 // pred_check
              _
            $region26: #{mf_forward.1} parent=23 // pred_check_branch
              %145 = sbr.rel (0) target = $region28
            $region27: #{mf_forward.1} parent=23 // pred_region
              loop: start=0, step=1, limit=1
              $region29: #{mf_forward.1} parent=27 // loop_pre_header
                _
              $region30: #{mf_forward.1} parent=27 // loop_header
                %s147 = sphi 0, %s151
                %p148 = scmp.ge.s32.totalorder %s147, 1
                %s152 = sphi %s141, %s141
                %s153 = sphi %s138, %s138
              $region31: #{mf_forward.1} parent=27 // loop_header_branch
                %150 = sbr.rel (%p148) target = $region35
              $region32: #{mf_forward.1} parent=27 // loop_body
                %v154 = vld [vmem:[%s152] sm:$0xff]
                %155 = vst [vmem:[%s153] sm:$0xff] %v154
                %v156 = vld [vmem:[%s152 + $0x8] sm:$0xff]
                %157 = vst [vmem:[%s153 + $0x8] sm:$0xff] %v156
                %v158 = vld [vmem:[%s152 + $0x20] sm:$0xff]
                %159 = vst [vmem:[%s153 + $0x10] sm:$0xff] %v158
                %v160 = vld [vmem:[%s152 + $0x28] sm:$0xff]
                %161 = vst [vmem:[%s153 + $0x18] sm:$0xff] %v160
                %v162 = vld [vmem:[%s152 + $0x40] sm:$0xff]
                %163 = vst [vmem:[%s153 + $0x20] sm:$0xff] %v162
                %v164 = vld [vmem:[%s152 + $0x48] sm:$0xff]
                %165 = vst [vmem:[%s153 + $0x28] sm:$0xff] %v164
                %v166 = vld [vmem:[%s152 + $0x60] sm:$0xff]
                %167 = vst [vmem:[%s153 + $0x30] sm:$0xff] %v166
                %v168 = vld [vmem:[%s152 + $0x68] sm:$0xff]
                %169 = vst [vmem:[%s153 + $0x38] sm:$0xff] %v168
              $region33: #{mf_forward.1} parent=27 // loop_footer
                %s151 = sadd.s32 1, %s147
              $region34: #{mf_forward.1} parent=27 // loop_footer_branch
                %146 = sbr.rel target = $region30
              $region35: #{mf_forward.1} parent=27 // loop_exit
                _
            $region28: #{mf_forward.1} parent=23 // pred_fallthru
              _
            // Predicated region
            $region36: #{mf_forward.1} parent=23 // pred_check
              _
            $region37: #{mf_forward.1} parent=23 // pred_check_branch
              %171 = sbr.rel target = $region39
            $region38: #{mf_forward.1} parent=23 // pred_region
              _
            $region39: #{mf_forward.1} parent=23 // pred_fallthru
              _
          $region24: #{mf_forward.1} parent=19 // pred_fallthru
            _
          %172 = vnop
        $region20: #{mf_forward.1} parent=15 // pred_fallthru
          _
        // Predicated region
        $region40: #{mf_forward.1} parent=15 // pred_check
          %p173 = pneg %p55
        $region41: #{mf_forward.1} parent=15 // pred_check_branch
          %175 = sbr.rel (%p173) target = $region43
        $region42: #{mf_forward.1} parent=15 // pred_region
          %s176 = sand.u32 %s45, 1
          %s177 = sand.u32 %s45, 1
          %s178 = smul.addr %s177, 64
          %s179 = scalar_lea.vmem [#allocation3], %s178
          %s180 = smul.u32 2, %s9
          %s181 = smul.addr %s180, 8
          %s182 = scalar_lea.vmem %s1, %s181
          // Predicated region
          $region44: #{mf_forward.1} parent=42 // pred_check
            _
          $region45: #{mf_forward.1} parent=42 // pred_check_branch
            %184 = sbr.rel (0) target = $region47
          $region46: #{mf_forward.1} parent=42 // pred_region
            // Predicated region
            $region48: #{mf_forward.1} parent=46 // pred_check
              _
            $region49: #{mf_forward.1} parent=46 // pred_check_branch
              %186 = sbr.rel (0) target = $region51
            $region50: #{mf_forward.1} parent=46 // pred_region
              loop: start=0, step=1, limit=1
              $region52: #{mf_forward.1} parent=50 // loop_pre_header
                _
              $region53: #{mf_forward.1} parent=50 // loop_header
                %s188 = sphi 0, %s192
                %p189 = scmp.ge.s32.totalorder %s188, 1
                %s193 = sphi %s182, %s182
                %s194 = sphi %s179, %s179
              $region54: #{mf_forward.1} parent=50 // loop_header_branch
                %191 = sbr.rel (%p189) target = $region58
              $region55: #{mf_forward.1} parent=50 // loop_body
                %v195 = vld [vmem:[%s193] sm:$0xff]
                %196 = vst [vmem:[%s194] sm:$0xff] %v195
                %v197 = vld [vmem:[%s193 + $0x8] sm:$0xff]
                %198 = vst [vmem:[%s194 + $0x8] sm:$0xff] %v197
                %v199 = vld [vmem:[%s193 + $0x20] sm:$0xff]
                %200 = vst [vmem:[%s194 + $0x10] sm:$0xff] %v199
                %v201 = vld [vmem:[%s193 + $0x28] sm:$0xff]
                %202 = vst [vmem:[%s194 + $0x18] sm:$0xff] %v201
                %v203 = vld [vmem:[%s193 + $0x40] sm:$0xff]
                %204 = vst [vmem:[%s194 + $0x20] sm:$0xff] %v203
                %v205 = vld [vmem:[%s193 + $0x48] sm:$0xff]
                %206 = vst [vmem:[%s194 + $0x28] sm:$0xff] %v205
                %v207 = vld [vmem:[%s193 + $0x60] sm:$0xff]
                %208 = vst [vmem:[%s194 + $0x30] sm:$0xff] %v207
                %v209 = vld [vmem:[%s193 + $0x68] sm:$0xff]
                %210 = vst [vmem:[%s194 + $0x38] sm:$0xff] %v209
              $region56: #{mf_forward.1} parent=50 // loop_footer
                %s192 = sadd.s32 1, %s188
              $region57: #{mf_forward.1} parent=50 // loop_footer_branch
                %187 = sbr.rel target = $region53
              $region58: #{mf_forward.1} parent=50 // loop_exit
                _
            $region51: #{mf_forward.1} parent=46 // pred_fallthru
              _
            // Predicated region
            $region59: #{mf_forward.1} parent=46 // pred_check
              _
            $region60: #{mf_forward.1} parent=46 // pred_check_branch
              %212 = sbr.rel target = $region62
            $region61: #{mf_forward.1} parent=46 // pred_region
              _
            $region62: #{mf_forward.1} parent=46 // pred_fallthru
              _
          $region47: #{mf_forward.1} parent=42 // pred_fallthru
            _
          %213 = vnop
        $region43: #{mf_forward.1} parent=15 // pred_fallthru
          _
        // Predicated region
        $region63: #{mf_forward.1} parent=15 // pred_check
          %p214 = pneg %p81
        $region64: #{mf_forward.1} parent=15 // pred_check_branch
          %216 = sbr.rel (%p214) target = $region66
        $region65: #{mf_forward.1} parent=15 // pred_region
          %s217 = smul.u32 2, %s9
          %p218 = scmp.lt.s32.totalorder %s217, 3
          %s219 = scalar_select %p218, %s217, 3
          %s220 = scalar_lea.vmem %s2, %s219
          %s221 = smul.u32 2, %s9
        $region66: #{mf_forward.1} parent=15 // pred_fallthru
          _
      $region16: #{mf_forward.1} parent=5 // pred_fallthru
        _
      %p222 = scmp.le.s32.totalorder 1, %s9
      %p223 = scmp.lt.s32.totalorder %s9, 3
      %p224 = pnand %p222, %p223
      %p225 = pneg %p224
      // Predicated region
      $region67: #{mf_forward.1} parent=5 // pred_check
        _
      $region68: #{mf_forward.1} parent=5 // pred_check_branch
        %227 = sbr.rel (%p224) target = $region70
      $region69: #{mf_forward.1} parent=5 // pred_region
        %s228 = ssub.s32 %s9, 1
        %s229 = sand.u32 %s22, 1
        %s230 = sand.u32 %s22, 1
        %s231 = smul.addr %s230, 64
        %s232 = scalar_lea.vmem [#allocation2], %s231
        // Predicated region
        $region71: #{mf_forward.1} parent=69 // pred_check
          %p233 = pneg %p35
        $region72: #{mf_forward.1} parent=69 // pred_check_branch
          %235 = sbr.rel (%p233) target = $region74
        $region73: #{mf_forward.1} parent=69 // pred_region
          _
        $region74: #{mf_forward.1} parent=69 // pred_fallthru
          _
        %s236 = sand.u32 %s48, 1
        %s237 = sand.u32 %s48, 1
        %s238 = smul.addr %s237, 64
        %s239 = scalar_lea.vmem [#allocation3], %s238
        // Predicated region
        $region75: #{mf_forward.1} parent=69 // pred_check
          %p240 = pneg %p61
        $region76: #{mf_forward.1} parent=69 // pred_check_branch
          %242 = sbr.rel (%p240) target = $region78
        $region77: #{mf_forward.1} parent=69 // pred_region
          _
        $region78: #{mf_forward.1} parent=69 // pred_fallthru
          _
        %s243 = sand.u32 %s22, 1
        %s244 = sand.u32 %s22, 1
        %s245 = smul.addr %s244, 64
        %s246 = scalar_lea.vmem [#allocation2], %s245
        %p247 = pneg %p35
        %p248 = pneg %p32
        %s249 = sand.u32 %s48, 1
        %s250 = sand.u32 %s48, 1
        %s251 = smul.addr %s250, 64
        %s252 = scalar_lea.vmem [#allocation3], %s251
        %p253 = pneg %p61
        %p254 = pneg %p58
        %s255 = smul.u32 2, %s14
        %p256 = scmp.lt.s32.totalorder %s255, 3
        %s257 = scalar_select %p256, %s255, 3
        %s258 = scalar_lea.vmem %s2, %s257
        %p259 = pneg %p87
        %p260 = pneg %p84
        %p261 = pneg %p113
        %p262 = pneg %p110
        %s263 = smul.u32 2, %s14
        %p264 = scmp.lt.s32.totalorder %s263, 3
        %s265 = scalar_select %p264, %s263, 3
        %s266 = scalar_lea.vmem %s3, %s265
        %s267 = smul.u32 2, %s14
        %s268 = smul.u32 2, %s14
        %s269 = smul.u32 2, %s14
        %p270 = scmp.lt.s32.totalorder %s269, 3
        %s271 = scalar_select %p270, %s269, 3
        %s272 = scalar_lea.vmem %s2, %s271
        %s273 = smul.u32 2, %s14
        %s274 = smul.u32 2, %s14
        %p275 = scmp.lt.s32.totalorder %s274, 3
        %s276 = scalar_select %p275, %s274, 3
        %s277 = scalar_lea.vmem %s3, %s276
        %s278 = smul.u32 2, %s14
        %v279 = vld [vmem:[%s232] sm:$0xff]
        %v280 = vld [vmem:[%s232 + $0x8] sm:$0xff]
        %v281 = vld [vmem:[%s232 + $0x10] sm:$0xff]
        %v282 = vld [vmem:[%s232 + $0x18] sm:$0xff]
        %v283 = vld [vmem:[%s232 + $0x20] sm:$0xff]
        %v284 = vld [vmem:[%s232 + $0x28] sm:$0xff]
        %v285 = vld [vmem:[%s232 + $0x30] sm:$0xff]
        %v286 = vld [vmem:[%s232 + $0x38] sm:$0xff]
        %v287 = vld [vmem:[%s239] sm:$0xff]
        %v288 = vld [vmem:[%s239 + $0x8] sm:$0xff]
        %v289 = vld [vmem:[%s239 + $0x10] sm:$0xff]
        %v290 = vld [vmem:[%s239 + $0x18] sm:$0xff]
        %v291 = vld [vmem:[%s239 + $0x20] sm:$0xff]
        %v292 = vld [vmem:[%s239 + $0x28] sm:$0xff]
        %v293 = vld [vmem:[%s239 + $0x30] sm:$0xff]
        %v294 = vld [vmem:[%s239 + $0x38] sm:$0xff]
        %v295 = vmul.f32 %v279, %v287
        %v296 = vmul.f32 %v280, %v288
        %v297 = vmul.f32 %v281, %v289
        %v298 = vmul.f32 %v282, %v290
        %v299 = vmul.f32 %v283, %v291
        %v300 = vmul.f32 %v284, %v292
        %v301 = vmul.f32 %v285, %v293
        %v302 = vmul.f32 %v286, %v294
        %v303 = vadd.f32 %v295, %v297
        %v304 = vadd.f32 %v303, %v299
        %v305 = vadd.f32 %v304, %v301
        %v306 = vrot.slane %v305, 4
        %v307 = vadd.f32 %v305, %v306
        %v308 = vrot.slane %v307, 2
        %v309 = vadd.f32 %v307, %v308
        %v310 = vrot.slane %v309, 1
        %v311 = vadd.f32 %v309, %v310
        %v312 = vadd.f32 %v296, %v298
        %v313 = vadd.f32 %v312, %v300
        %v314 = vadd.f32 %v313, %v302
        %v315 = vrot.slane %v314, 4
        %v316 = vadd.f32 %v314, %v315
        %v317 = vrot.slane %v316, 2
        %v318 = vadd.f32 %v316, %v317
        %v319 = vrot.slane %v318, 1
        %v320 = vadd.f32 %v318, %v319
        %v321 = vld [vmem:[%s272] sm:$0x3]
        %v323 = vlaneseq
        %v324 = vshrl.u32 %v323, 7
        %v325 = vsub.s32 0, %v324
        %v326 = vrot.slane %v321, %v325
        %v327 = vlaneseq
        %v328 = vshrl.u32 %v327, 7
        %v329 = vsub.s32 1, %v328
        %v330 = vrot.slane %v321, %v329
        %v333 = vadd.f32 %v311, %v326
        %v334 = vadd.f32 %v320, %v330
        %v337 = vcombine.low %v333, %v334
        %v339 = vunpack.c.l.s4 1966171168
        %v340 = vunpack.c.0.s8 %v339
        %v341 = vlaneseq
        %v342 = vshrl.u32 %v341, 7
        %v343 = vsub.s32 %v340, %v342
        %v344 = vrot.slane %v337, %v343
        %v346 = vunpack.c.l.s4 1966171168
        %v347 = vunpack.c.0.s8 %v346
        %v348 = vlaneseq
        %v349 = vshrl.u32 %v348, 7
        %v350 = vsub.s32 %v347, %v349
        %v351 = vrot.slane %v344, %v350
        %v353 = vlaneseq
        %vm354 = vcmp.ge.s32.totalorder %v353, 0
        %vm355 = vcmp.lt.s32.totalorder %v353, 256
        %vm356 = vmand %vm354, %vm355
        %357 = vst.msk [vmem:[%s277] sm:$0x3] %vm356, %v351
        %s358 = smul.u32 2, %s14
        %p359 = scmp.lt.s32.totalorder %s358, 3
        %s360 = scalar_select %p359, %s358, 3
        %s361 = scalar_lea.vmem %s3, %s360
        // Predicated region
        $region79: #{mf_forward.1} parent=69 // pred_check
          %p362 = pneg %p110
        $region80: #{mf_forward.1} parent=69 // pred_check_branch
          %364 = sbr.rel (%p362) target = $region82
        $region81: #{mf_forward.1} parent=69 // pred_region
          %s365 = smul.u32 2, %s14
        $region82: #{mf_forward.1} parent=69 // pred_fallthru
          _
      $region70: #{mf_forward.1} parent=5 // pred_fallthru
        _
      %p366 = scmp.le.s32.totalorder 2, %s9
      // Predicated region
      $region83: #{mf_forward.1} parent=5 // pred_check
        %p367 = pneg %p366
      $region84: #{mf_forward.1} parent=5 // pred_check_branch
        %369 = sbr.rel (%p367) target = $region86
      $region85: #{mf_forward.1} parent=5 // pred_region
        %s370 = ssub.s32 %s9, 2
        // Predicated region
        $region87: #{mf_forward.1} parent=85 // pred_check
          %p371 = pneg %p116
        $region88: #{mf_forward.1} parent=85 // pred_check_branch
          %373 = sbr.rel (%p371) target = $region90
        $region89: #{mf_forward.1} parent=85 // pred_region
          %s374 = smul.u32 2, %s15
          %p375 = scmp.lt.s32.totalorder %s374, 3
          %s376 = scalar_select %p375, %s374, 3
          %s377 = scalar_lea.vmem %s3, %s376
        $region90: #{mf_forward.1} parent=85 // pred_fallthru
          _
      $region86: #{mf_forward.1} parent=5 // pred_fallthru
        _
    $region6: #{mf_forward.1} parent=1 // loop_footer
      %s13 = sadd.s32 1, %s9
    $region7: #{mf_forward.1} parent=1 // loop_footer_branch
      %8 = sbr.rel target = $region3
    $region8: #{mf_forward.1} parent=1 // loop_exit
      _

</llo_original>
